<compile_context>
chip_gen: v6e
topology: v6e:2x2x1
jax: 0.10.0
libtpu: 0.0.40
codegen_flags: <defaults>
</compile_context>

<pallas_src>
import functools

import jax
import jax.numpy as jnp
from jax.experimental import pallas as pl
from jax.experimental.pallas import tpu as pltpu


def _dw_conv_bn_relu_kernel(x_ref, w_ref, b_ref, o_ref, *, kh, kw, pad_h, pad_w):
    """One (batch, channel) image: depthwise conv (BN scale pre-folded) + shift + ReLU.

    x_ref: (1, 1, H, W)       unpadded input image for this (n, c) grid point (VMEM)
    w_ref: (C * kh * kw,)     BN-scale-folded depthwise weights, flat row-major (ky, kx), f32 (SMEM)
    b_ref: (C,)               folded BN shift, f32 (SMEM)
    o_ref: (1, 1, H_out, W_out)
    """
    H, W = x_ref.shape[2], x_ref.shape[3]
    H_out, W_out = o_ref.shape[2], o_ref.shape[3]
    c = pl.program_id(1)

    x = x_ref[0, 0]                                      # (H, W) in input dtype (no full-tile upcast)
    hh = jax.lax.broadcasted_iota(jnp.int32, (H, W), 0)  # row index of each element
    ww = jax.lax.broadcasted_iota(jnp.int32, (H, W), 1)  # col index of each element

    acc = jnp.zeros((H, W), jnp.float32)
    for ky in range(kh):
        dy = ky - pad_h
        # Row shift via XLU sublane roll; wrapped rows are masked out below (zero padding).
        xh = x if dy == 0 else pltpu.roll(x, (-dy) % H, 0)
        row_ok = jnp.logical_and(hh + dy >= 0, hh + dy < H)
        for kx in range(kw):
            dx = kx - pad_w
            # Column shift via XLU lane roll.
            xs = xh if dx == 0 else pltpu.roll(xh, (-dx) % W, 1)
            ok = jnp.logical_and(row_ok,
                                 jnp.logical_and(ww + dx >= 0, ww + dx < W))
            wt = w_ref[c * (kh * kw) + ky * kw + kx]     # scalar from SMEM (BN scale folded in)
            acc = acc + jnp.where(ok, xs, 0.0).astype(jnp.float32) * wt

    y = acc + b_ref[c]                                   # folded BN shift
    y = jnp.maximum(y, 0.0)                              # ReLU
    o_ref[0, 0] = y[:H_out, :W_out].astype(o_ref.dtype)


def basic_sep_conv(x_nchw, weight, gamma, beta, running_mean, running_var,
                   *, padding=1, eps=1e-5):
    """BasicSepConv forward (stride=1, dilation=1): depthwise conv -> BN (inference) -> ReLU.

    x_nchw: (N, C, H, W) as in PyTorch; weight: (C, 1, kh, kw) depthwise conv weight.
    Returns (N, C, H_out, W_out). Layout stays NCHW end to end (no wrapper transposes/pad).
    """
    N, C, H, W = x_nchw.shape
    kh, kw = int(weight.shape[2]), int(weight.shape[3])
    H_out = H + 2 * padding - kh + 1
    W_out = W + 2 * padding - kw + 1
    if not (0 < H_out <= H and 0 < W_out <= W):
        # TODO(synk): padding > (kernel_size - 1)//2 (output larger than input grid) not supported.
        raise NotImplementedError("basic_sep_conv requires 2*padding <= kernel_size - 1")

    # Fold BN inference stats into the conv weights (scale) and a per-channel shift.
    scale = gamma / jnp.sqrt(running_var + eps)                                  # (C,)
    w_flat = (weight[:, 0, :, :] * scale[:, None, None]).reshape(-1)
    w_flat = w_flat.astype(jnp.float32)                                          # (C*kh*kw,)
    shift = (beta - running_mean * scale).astype(jnp.float32)                    # (C,)

    kernel = functools.partial(_dw_conv_bn_relu_kernel,
                               kh=kh, kw=kw, pad_h=padding, pad_w=padding)

    return pl.pallas_call(
        kernel,
        out_shape=jax.ShapeDtypeStruct((N, C, H_out, W_out), x_nchw.dtype),
        grid_spec=pltpu.PrefetchScalarGridSpec(
            num_scalar_prefetch=0,
            grid=(N, C),
            in_specs=[
                # One (H, W) channel image per grid step: W on lanes, H on sublanes.
                pl.BlockSpec((1, 1, H, W), lambda n, c: (n, c, 0, 0)),
                # Tiny per-channel parameters live in SMEM, read as scalars in the kernel.
                pl.BlockSpec(memory_space=pltpu.MemorySpace.SMEM),
                pl.BlockSpec(memory_space=pltpu.MemorySpace.SMEM),
            ],
            out_specs=pl.BlockSpec((1, 1, H_out, W_out), lambda n, c: (n, c, 0, 0)),
        ),
        compiler_params=pltpu.CompilerParams(
            dimension_semantics=("parallel", "parallel")),
    )(x_nchw, w_flat, shift)


def _reference(x_nchw, weight, gamma, beta, running_mean, running_var, *, padding=1, eps=1e-5):
    # Pure-JAX reference: depthwise conv + inference BN + ReLU.
    C = x_nchw.shape[1]
    y = jax.lax.conv_general_dilated(
        x_nchw.astype(jnp.float32), weight.astype(jnp.float32),
        window_strides=(1, 1), padding=((padding, padding), (padding, padding)),
        dimension_numbers=("NCHW", "OIHW", "NCHW"), feature_group_count=C)
    scale = (gamma / jnp.sqrt(running_var + eps)).reshape(1, C, 1, 1)
    shift = (beta - running_mean * gamma / jnp.sqrt(running_var + eps)).reshape(1, C, 1, 1)
    return jnp.maximum(y * scale + shift, 0.0)


if __name__ == "__main__":
    # Small shapes consistent with BasicSepConv(in_planes=4, kernel_size=3, padding=1).
    N, C, H, W = 2, 4, 16, 16
    kh = kw = 3
    padding = 1

    key = jax.random.PRNGKey(0)
    k_x, k_w, k_g, k_b = jax.random.split(key, 4)
    x = jax.random.normal(k_x, (N, C, H, W), dtype=jnp.float32)
    weight = jax.random.normal(k_w, (C, 1, kh, kw), dtype=jnp.float32) * 0.1  # depthwise conv weight
    gamma = jax.random.normal(k_g, (C,), dtype=jnp.float32) * 0.1 + 1.0       # BN weight
    beta = jax.random.normal(k_b, (C,), dtype=jnp.float32) * 0.1              # BN bias
    running_mean = jnp.zeros((C,), dtype=jnp.float32)
    running_var = jnp.ones((C,), dtype=jnp.float32)

    out = basic_sep_conv(x, weight, gamma, beta, running_mean, running_var, padding=padding)
    out = jax.block_until_ready(out)

    ref = _reference(x, weight, gamma, beta, running_mean, running_var, padding=padding)
    assert out.shape == (N, C, H, W), out.shape
    assert jnp.allclose(out, ref, atol=1e-4, rtol=1e-4), float(jnp.max(jnp.abs(out - ref)))
    print("KERNEL_OK")
</pallas_src>

<mosaic_0001>
module attributes {stable_mosaic.version = 11 : i64} {
  func.func @_dw_conv_bn_relu_kernel(%arg0: i32, %arg1: i32, %arg2: memref<1x1x16x16xf32, #tpu.memory_space<vmem>>, %arg3: memref<36xf32, #tpu.memory_space<smem>>, %arg4: memref<4xf32, #tpu.memory_space<smem>>, %arg5: memref<1x1x16x16xf32, #tpu.memory_space<vmem>>) attributes {dimension_semantics = [#tpu.dimension_semantics<parallel>, #tpu.dimension_semantics<parallel>], iteration_bounds = array<i64: 2, 4>, scalar_prefetch = 0 : i64, scratch_operands = 0 : i64, tpu.core_type = #tpu.core_type<tc>, window_params = [{transform_indices = @transform_0, window_bounds = array<i64: 1, 1, 16, 16>}, {transform_indices = @transform_1, window_bounds = array<i64: 36>}, {transform_indices = @transform_2, window_bounds = array<i64: 4>}, {transform_indices = @transform_3, window_bounds = array<i64: 1, 1, 16, 16>}]} {
    %c0 = arith.constant 0 : index
    %c0_0 = arith.constant 0 : index
    %c0_1 = arith.constant 0 : index
    %c0_2 = arith.constant 0 : index
    %0 = vector.load %arg2[%c0, %c0_0, %c0_1, %c0_2] : memref<1x1x16x16xf32, #tpu.memory_space<vmem>>, vector<1x1x16x16xf32>
    %1 = vector.shape_cast %0 : vector<1x1x16x16xf32> to vector<16x16xf32>
    %2 = tpu.iota {dimensions = array<i32: 0>} : vector<16x16xi32>
    %3 = tpu.iota {dimensions = array<i32: 1>} : vector<16x16xi32>
    %cst = arith.constant 0.000000e+00 : f32
    %4 = vector.broadcast %cst : f32 to vector<16x16xf32>
    %c1_i32 = arith.constant 1 : i32
    %5 = tpu.dynamic_rotate %1 by %c1_i32 dim 0 : vector<16x16xf32>, i32 -> vector<16x16xf32>
    %c-1_i32 = arith.constant -1 : i32
    %6 = vector.broadcast %c-1_i32 : i32 to vector<16x16xi32>
    %7 = arith.addi %2, %6 : vector<16x16xi32>
    %c0_i32 = arith.constant 0 : i32
    %8 = vector.broadcast %c0_i32 : i32 to vector<16x16xi32>
    %9 = arith.cmpi sge, %7, %8 : vector<16x16xi32>
    %c-1_i32_3 = arith.constant -1 : i32
    %10 = vector.broadcast %c-1_i32_3 : i32 to vector<16x16xi32>
    %11 = arith.addi %2, %10 : vector<16x16xi32>
    %c16_i32 = arith.constant 16 : i32
    %12 = vector.broadcast %c16_i32 : i32 to vector<16x16xi32>
    %13 = arith.cmpi slt, %11, %12 : vector<16x16xi32>
    %14 = arith.andi %9, %13 : vector<16x16xi1>
    %c1_i32_4 = arith.constant 1 : i32
    %15 = tpu.dynamic_rotate %5 by %c1_i32_4 dim 1 : vector<16x16xf32>, i32 -> vector<16x16xf32>
    %c-1_i32_5 = arith.constant -1 : i32
    %16 = vector.broadcast %c-1_i32_5 : i32 to vector<16x16xi32>
    %17 = arith.addi %3, %16 : vector<16x16xi32>
    %c0_i32_6 = arith.constant 0 : i32
    %18 = vector.broadcast %c0_i32_6 : i32 to vector<16x16xi32>
    %19 = arith.cmpi sge, %17, %18 : vector<16x16xi32>
    %c-1_i32_7 = arith.constant -1 : i32
    %20 = vector.broadcast %c-1_i32_7 : i32 to vector<16x16xi32>
    %21 = arith.addi %3, %20 : vector<16x16xi32>
    %c16_i32_8 = arith.constant 16 : i32
    %22 = vector.broadcast %c16_i32_8 : i32 to vector<16x16xi32>
    %23 = arith.cmpi slt, %21, %22 : vector<16x16xi32>
    %24 = arith.andi %19, %23 : vector<16x16xi1>
    %25 = arith.andi %14, %24 : vector<16x16xi1>
    %c9_i32 = arith.constant 9 : i32
    %26 = arith.muli %arg1, %c9_i32 : i32
    %c0_i32_9 = arith.constant 0 : i32
    %27 = arith.addi %26, %c0_i32_9 : i32
    %c0_i32_10 = arith.constant 0 : i32
    %28 = arith.addi %27, %c0_i32_10 : i32
    %29 = arith.index_cast %28 : i32 to index
    %30 = memref.load %arg3[%29] : memref<36xf32, #tpu.memory_space<smem>>
    %cst_11 = arith.constant 0.000000e+00 : f32
    %31 = vector.broadcast %cst_11 : f32 to vector<16x16xf32>
    %32 = arith.select %25, %15, %31 : vector<16x16xi1>, vector<16x16xf32>
    %33 = vector.broadcast %30 : f32 to vector<16x16xf32>
    %34 = arith.mulf %32, %33 : vector<16x16xf32>
    %35 = arith.addf %4, %34 : vector<16x16xf32>
    %c0_i32_12 = arith.constant 0 : i32
    %36 = vector.broadcast %c0_i32_12 : i32 to vector<16x16xi32>
    %37 = arith.addi %3, %36 : vector<16x16xi32>
    %c0_i32_13 = arith.constant 0 : i32
    %38 = vector.broadcast %c0_i32_13 : i32 to vector<16x16xi32>
    %39 = arith.cmpi sge, %37, %38 : vector<16x16xi32>
    %c0_i32_14 = arith.constant 0 : i32
    %40 = vector.broadcast %c0_i32_14 : i32 to vector<16x16xi32>
    %41 = arith.addi %3, %40 : vector<16x16xi32>
    %c16_i32_15 = arith.constant 16 : i32
    %42 = vector.broadcast %c16_i32_15 : i32 to vector<16x16xi32>
    %43 = arith.cmpi slt, %41, %42 : vector<16x16xi32>
    %44 = arith.andi %39, %43 : vector<16x16xi1>
    %45 = arith.andi %14, %44 : vector<16x16xi1>
    %c9_i32_16 = arith.constant 9 : i32
    %46 = arith.muli %arg1, %c9_i32_16 : i32
    %c0_i32_17 = arith.constant 0 : i32
    %47 = arith.addi %46, %c0_i32_17 : i32
    %c1_i32_18 = arith.constant 1 : i32
    %48 = arith.addi %47, %c1_i32_18 : i32
    %49 = arith.index_cast %48 : i32 to index
    %50 = memref.load %arg3[%49] : memref<36xf32, #tpu.memory_space<smem>>
    %cst_19 = arith.constant 0.000000e+00 : f32
    %51 = vector.broadcast %cst_19 : f32 to vector<16x16xf32>
    %52 = arith.select %45, %5, %51 : vector<16x16xi1>, vector<16x16xf32>
    %53 = vector.broadcast %50 : f32 to vector<16x16xf32>
    %54 = arith.mulf %52, %53 : vector<16x16xf32>
    %55 = arith.addf %35, %54 : vector<16x16xf32>
    %c15_i32 = arith.constant 15 : i32
    %56 = tpu.dynamic_rotate %5 by %c15_i32 dim 1 : vector<16x16xf32>, i32 -> vector<16x16xf32>
    %c1_i32_20 = arith.constant 1 : i32
    %57 = vector.broadcast %c1_i32_20 : i32 to vector<16x16xi32>
    %58 = arith.addi %3, %57 : vector<16x16xi32>
    %c0_i32_21 = arith.constant 0 : i32
    %59 = vector.broadcast %c0_i32_21 : i32 to vector<16x16xi32>
    %60 = arith.cmpi sge, %58, %59 : vector<16x16xi32>
    %c1_i32_22 = arith.constant 1 : i32
    %61 = vector.broadcast %c1_i32_22 : i32 to vector<16x16xi32>
    %62 = arith.addi %3, %61 : vector<16x16xi32>
    %c16_i32_23 = arith.constant 16 : i32
    %63 = vector.broadcast %c16_i32_23 : i32 to vector<16x16xi32>
    %64 = arith.cmpi slt, %62, %63 : vector<16x16xi32>
    %65 = arith.andi %60, %64 : vector<16x16xi1>
    %66 = arith.andi %14, %65 : vector<16x16xi1>
    %c9_i32_24 = arith.constant 9 : i32
    %67 = arith.muli %arg1, %c9_i32_24 : i32
    %c0_i32_25 = arith.constant 0 : i32
    %68 = arith.addi %67, %c0_i32_25 : i32
    %c2_i32 = arith.constant 2 : i32
    %69 = arith.addi %68, %c2_i32 : i32
    %70 = arith.index_cast %69 : i32 to index
    %71 = memref.load %arg3[%70] : memref<36xf32, #tpu.memory_space<smem>>
    %cst_26 = arith.constant 0.000000e+00 : f32
    %72 = vector.broadcast %cst_26 : f32 to vector<16x16xf32>
    %73 = arith.select %66, %56, %72 : vector<16x16xi1>, vector<16x16xf32>
    %74 = vector.broadcast %71 : f32 to vector<16x16xf32>
    %75 = arith.mulf %73, %74 : vector<16x16xf32>
    %76 = arith.addf %55, %75 : vector<16x16xf32>
    %c0_i32_27 = arith.constant 0 : i32
    %77 = vector.broadcast %c0_i32_27 : i32 to vector<16x16xi32>
    %78 = arith.addi %2, %77 : vector<16x16xi32>
    %c0_i32_28 = arith.constant 0 : i32
    %79 = vector.broadcast %c0_i32_28 : i32 to vector<16x16xi32>
    %80 = arith.cmpi sge, %78, %79 : vector<16x16xi32>
    %c0_i32_29 = arith.constant 0 : i32
    %81 = vector.broadcast %c0_i32_29 : i32 to vector<16x16xi32>
    %82 = arith.addi %2, %81 : vector<16x16xi32>
    %c16_i32_30 = arith.constant 16 : i32
    %83 = vector.broadcast %c16_i32_30 : i32 to vector<16x16xi32>
    %84 = arith.cmpi slt, %82, %83 : vector<16x16xi32>
    %85 = arith.andi %80, %84 : vector<16x16xi1>
    %c1_i32_31 = arith.constant 1 : i32
    %86 = tpu.dynamic_rotate %1 by %c1_i32_31 dim 1 : vector<16x16xf32>, i32 -> vector<16x16xf32>
    %c-1_i32_32 = arith.constant -1 : i32
    %87 = vector.broadcast %c-1_i32_32 : i32 to vector<16x16xi32>
    %88 = arith.addi %3, %87 : vector<16x16xi32>
    %c0_i32_33 = arith.constant 0 : i32
    %89 = vector.broadcast %c0_i32_33 : i32 to vector<16x16xi32>
    %90 = arith.cmpi sge, %88, %89 : vector<16x16xi32>
    %c-1_i32_34 = arith.constant -1 : i32
    %91 = vector.broadcast %c-1_i32_34 : i32 to vector<16x16xi32>
    %92 = arith.addi %3, %91 : vector<16x16xi32>
    %c16_i32_35 = arith.constant 16 : i32
    %93 = vector.broadcast %c16_i32_35 : i32 to vector<16x16xi32>
    %94 = arith.cmpi slt, %92, %93 : vector<16x16xi32>
    %95 = arith.andi %90, %94 : vector<16x16xi1>
    %96 = arith.andi %85, %95 : vector<16x16xi1>
    %c9_i32_36 = arith.constant 9 : i32
    %97 = arith.muli %arg1, %c9_i32_36 : i32
    %c3_i32 = arith.constant 3 : i32
    %98 = arith.addi %97, %c3_i32 : i32
    %c0_i32_37 = arith.constant 0 : i32
    %99 = arith.addi %98, %c0_i32_37 : i32
    %100 = arith.index_cast %99 : i32 to index
    %101 = memref.load %arg3[%100] : memref<36xf32, #tpu.memory_space<smem>>
    %cst_38 = arith.constant 0.000000e+00 : f32
    %102 = vector.broadcast %cst_38 : f32 to vector<16x16xf32>
    %103 = arith.select %96, %86, %102 : vector<16x16xi1>, vector<16x16xf32>
    %104 = vector.broadcast %101 : f32 to vector<16x16xf32>
    %105 = arith.mulf %103, %104 : vector<16x16xf32>
    %106 = arith.addf %76, %105 : vector<16x16xf32>
    %c0_i32_39 = arith.constant 0 : i32
    %107 = vector.broadcast %c0_i32_39 : i32 to vector<16x16xi32>
    %108 = arith.addi %3, %107 : vector<16x16xi32>
    %c0_i32_40 = arith.constant 0 : i32
    %109 = vector.broadcast %c0_i32_40 : i32 to vector<16x16xi32>
    %110 = arith.cmpi sge, %108, %109 : vector<16x16xi32>
    %c0_i32_41 = arith.constant 0 : i32
    %111 = vector.broadcast %c0_i32_41 : i32 to vector<16x16xi32>
    %112 = arith.addi %3, %111 : vector<16x16xi32>
    %c16_i32_42 = arith.constant 16 : i32
    %113 = vector.broadcast %c16_i32_42 : i32 to vector<16x16xi32>
    %114 = arith.cmpi slt, %112, %113 : vector<16x16xi32>
    %115 = arith.andi %110, %114 : vector<16x16xi1>
    %116 = arith.andi %85, %115 : vector<16x16xi1>
    %c9_i32_43 = arith.constant 9 : i32
    %117 = arith.muli %arg1, %c9_i32_43 : i32
    %c3_i32_44 = arith.constant 3 : i32
    %118 = arith.addi %117, %c3_i32_44 : i32
    %c1_i32_45 = arith.constant 1 : i32
    %119 = arith.addi %118, %c1_i32_45 : i32
    %120 = arith.index_cast %119 : i32 to index
    %121 = memref.load %arg3[%120] : memref<36xf32, #tpu.memory_space<smem>>
    %cst_46 = arith.constant 0.000000e+00 : f32
    %122 = vector.broadcast %cst_46 : f32 to vector<16x16xf32>
    %123 = arith.select %116, %1, %122 : vector<16x16xi1>, vector<16x16xf32>
    %124 = vector.broadcast %121 : f32 to vector<16x16xf32>
    %125 = arith.mulf %123, %124 : vector<16x16xf32>
    %126 = arith.addf %106, %125 : vector<16x16xf32>
    %c15_i32_47 = arith.constant 15 : i32
    %127 = tpu.dynamic_rotate %1 by %c15_i32_47 dim 1 : vector<16x16xf32>, i32 -> vector<16x16xf32>
    %c1_i32_48 = arith.constant 1 : i32
    %128 = vector.broadcast %c1_i32_48 : i32 to vector<16x16xi32>
    %129 = arith.addi %3, %128 : vector<16x16xi32>
    %c0_i32_49 = arith.constant 0 : i32
    %130 = vector.broadcast %c0_i32_49 : i32 to vector<16x16xi32>
    %131 = arith.cmpi sge, %129, %130 : vector<16x16xi32>
    %c1_i32_50 = arith.constant 1 : i32
    %132 = vector.broadcast %c1_i32_50 : i32 to vector<16x16xi32>
    %133 = arith.addi %3, %132 : vector<16x16xi32>
    %c16_i32_51 = arith.constant 16 : i32
    %134 = vector.broadcast %c16_i32_51 : i32 to vector<16x16xi32>
    %135 = arith.cmpi slt, %133, %134 : vector<16x16xi32>
    %136 = arith.andi %131, %135 : vector<16x16xi1>
    %137 = arith.andi %85, %136 : vector<16x16xi1>
    %c9_i32_52 = arith.constant 9 : i32
    %138 = arith.muli %arg1, %c9_i32_52 : i32
    %c3_i32_53 = arith.constant 3 : i32
    %139 = arith.addi %138, %c3_i32_53 : i32
    %c2_i32_54 = arith.constant 2 : i32
    %140 = arith.addi %139, %c2_i32_54 : i32
    %141 = arith.index_cast %140 : i32 to index
    %142 = memref.load %arg3[%141] : memref<36xf32, #tpu.memory_space<smem>>
    %cst_55 = arith.constant 0.000000e+00 : f32
    %143 = vector.broadcast %cst_55 : f32 to vector<16x16xf32>
    %144 = arith.select %137, %127, %143 : vector<16x16xi1>, vector<16x16xf32>
    %145 = vector.broadcast %142 : f32 to vector<16x16xf32>
    %146 = arith.mulf %144, %145 : vector<16x16xf32>
    %147 = arith.addf %126, %146 : vector<16x16xf32>
    %c15_i32_56 = arith.constant 15 : i32
    %148 = tpu.dynamic_rotate %1 by %c15_i32_56 dim 0 : vector<16x16xf32>, i32 -> vector<16x16xf32>
    %c1_i32_57 = arith.constant 1 : i32
    %149 = vector.broadcast %c1_i32_57 : i32 to vector<16x16xi32>
    %150 = arith.addi %2, %149 : vector<16x16xi32>
    %c0_i32_58 = arith.constant 0 : i32
    %151 = vector.broadcast %c0_i32_58 : i32 to vector<16x16xi32>
    %152 = arith.cmpi sge, %150, %151 : vector<16x16xi32>
    %c1_i32_59 = arith.constant 1 : i32
    %153 = vector.broadcast %c1_i32_59 : i32 to vector<16x16xi32>
    %154 = arith.addi %2, %153 : vector<16x16xi32>
    %c16_i32_60 = arith.constant 16 : i32
    %155 = vector.broadcast %c16_i32_60 : i32 to vector<16x16xi32>
    %156 = arith.cmpi slt, %154, %155 : vector<16x16xi32>
    %157 = arith.andi %152, %156 : vector<16x16xi1>
    %c1_i32_61 = arith.constant 1 : i32
    %158 = tpu.dynamic_rotate %148 by %c1_i32_61 dim 1 : vector<16x16xf32>, i32 -> vector<16x16xf32>
    %c-1_i32_62 = arith.constant -1 : i32
    %159 = vector.broadcast %c-1_i32_62 : i32 to vector<16x16xi32>
    %160 = arith.addi %3, %159 : vector<16x16xi32>
    %c0_i32_63 = arith.constant 0 : i32
    %161 = vector.broadcast %c0_i32_63 : i32 to vector<16x16xi32>
    %162 = arith.cmpi sge, %160, %161 : vector<16x16xi32>
    %c-1_i32_64 = arith.constant -1 : i32
    %163 = vector.broadcast %c-1_i32_64 : i32 to vector<16x16xi32>
    %164 = arith.addi %3, %163 : vector<16x16xi32>
    %c16_i32_65 = arith.constant 16 : i32
    %165 = vector.broadcast %c16_i32_65 : i32 to vector<16x16xi32>
    %166 = arith.cmpi slt, %164, %165 : vector<16x16xi32>
    %167 = arith.andi %162, %166 : vector<16x16xi1>
    %168 = arith.andi %157, %167 : vector<16x16xi1>
    %c9_i32_66 = arith.constant 9 : i32
    %169 = arith.muli %arg1, %c9_i32_66 : i32
    %c6_i32 = arith.constant 6 : i32
    %170 = arith.addi %169, %c6_i32 : i32
    %c0_i32_67 = arith.constant 0 : i32
    %171 = arith.addi %170, %c0_i32_67 : i32
    %172 = arith.index_cast %171 : i32 to index
    %173 = memref.load %arg3[%172] : memref<36xf32, #tpu.memory_space<smem>>
    %cst_68 = arith.constant 0.000000e+00 : f32
    %174 = vector.broadcast %cst_68 : f32 to vector<16x16xf32>
    %175 = arith.select %168, %158, %174 : vector<16x16xi1>, vector<16x16xf32>
    %176 = vector.broadcast %173 : f32 to vector<16x16xf32>
    %177 = arith.mulf %175, %176 : vector<16x16xf32>
    %178 = arith.addf %147, %177 : vector<16x16xf32>
    %c0_i32_69 = arith.constant 0 : i32
    %179 = vector.broadcast %c0_i32_69 : i32 to vector<16x16xi32>
    %180 = arith.addi %3, %179 : vector<16x16xi32>
    %c0_i32_70 = arith.constant 0 : i32
    %181 = vector.broadcast %c0_i32_70 : i32 to vector<16x16xi32>
    %182 = arith.cmpi sge, %180, %181 : vector<16x16xi32>
    %c0_i32_71 = arith.constant 0 : i32
    %183 = vector.broadcast %c0_i32_71 : i32 to vector<16x16xi32>
    %184 = arith.addi %3, %183 : vector<16x16xi32>
    %c16_i32_72 = arith.constant 16 : i32
    %185 = vector.broadcast %c16_i32_72 : i32 to vector<16x16xi32>
    %186 = arith.cmpi slt, %184, %185 : vector<16x16xi32>
    %187 = arith.andi %182, %186 : vector<16x16xi1>
    %188 = arith.andi %157, %187 : vector<16x16xi1>
    %c9_i32_73 = arith.constant 9 : i32
    %189 = arith.muli %arg1, %c9_i32_73 : i32
    %c6_i32_74 = arith.constant 6 : i32
    %190 = arith.addi %189, %c6_i32_74 : i32
    %c1_i32_75 = arith.constant 1 : i32
    %191 = arith.addi %190, %c1_i32_75 : i32
    %192 = arith.index_cast %191 : i32 to index
    %193 = memref.load %arg3[%192] : memref<36xf32, #tpu.memory_space<smem>>
    %cst_76 = arith.constant 0.000000e+00 : f32
    %194 = vector.broadcast %cst_76 : f32 to vector<16x16xf32>
    %195 = arith.select %188, %148, %194 : vector<16x16xi1>, vector<16x16xf32>
    %196 = vector.broadcast %193 : f32 to vector<16x16xf32>
    %197 = arith.mulf %195, %196 : vector<16x16xf32>
    %198 = arith.addf %178, %197 : vector<16x16xf32>
    %c15_i32_77 = arith.constant 15 : i32
    %199 = tpu.dynamic_rotate %148 by %c15_i32_77 dim 1 : vector<16x16xf32>, i32 -> vector<16x16xf32>
    %c1_i32_78 = arith.constant 1 : i32
    %200 = vector.broadcast %c1_i32_78 : i32 to vector<16x16xi32>
    %201 = arith.addi %3, %200 : vector<16x16xi32>
    %c0_i32_79 = arith.constant 0 : i32
    %202 = vector.broadcast %c0_i32_79 : i32 to vector<16x16xi32>
    %203 = arith.cmpi sge, %201, %202 : vector<16x16xi32>
    %c1_i32_80 = arith.constant 1 : i32
    %204 = vector.broadcast %c1_i32_80 : i32 to vector<16x16xi32>
    %205 = arith.addi %3, %204 : vector<16x16xi32>
    %c16_i32_81 = arith.constant 16 : i32
    %206 = vector.broadcast %c16_i32_81 : i32 to vector<16x16xi32>
    %207 = arith.cmpi slt, %205, %206 : vector<16x16xi32>
    %208 = arith.andi %203, %207 : vector<16x16xi1>
    %209 = arith.andi %157, %208 : vector<16x16xi1>
    %c9_i32_82 = arith.constant 9 : i32
    %210 = arith.muli %arg1, %c9_i32_82 : i32
    %c6_i32_83 = arith.constant 6 : i32
    %211 = arith.addi %210, %c6_i32_83 : i32
    %c2_i32_84 = arith.constant 2 : i32
    %212 = arith.addi %211, %c2_i32_84 : i32
    %213 = arith.index_cast %212 : i32 to index
    %214 = memref.load %arg3[%213] : memref<36xf32, #tpu.memory_space<smem>>
    %cst_85 = arith.constant 0.000000e+00 : f32
    %215 = vector.broadcast %cst_85 : f32 to vector<16x16xf32>
    %216 = arith.select %209, %199, %215 : vector<16x16xi1>, vector<16x16xf32>
    %217 = vector.broadcast %214 : f32 to vector<16x16xf32>
    %218 = arith.mulf %216, %217 : vector<16x16xf32>
    %219 = arith.addf %198, %218 : vector<16x16xf32>
    %220 = arith.index_cast %arg1 : i32 to index
    %221 = memref.load %arg4[%220] : memref<4xf32, #tpu.memory_space<smem>>
    %222 = vector.broadcast %221 : f32 to vector<16x16xf32>
    %223 = arith.addf %219, %222 : vector<16x16xf32>
    %cst_86 = arith.constant 0.000000e+00 : f32
    %224 = vector.broadcast %cst_86 : f32 to vector<16x16xf32>
    %225 = arith.maximumf %223, %224 : vector<16x16xf32>
    %c0_87 = arith.constant 0 : index
    %c0_88 = arith.constant 0 : index
    %c0_89 = arith.constant 0 : index
    %c0_90 = arith.constant 0 : index
    %226 = vector.load %arg5[%c0_87, %c0_88, %c0_89, %c0_90] : memref<1x1x16x16xf32, #tpu.memory_space<vmem>>, vector<1x1x16x16xf32>
    %227 = vector.shape_cast %226 : vector<1x1x16x16xf32> to vector<16x16xf32>
    %228 = vector.shape_cast %225 : vector<16x16xf32> to vector<1x1x16x16xf32>
    tpu.vector_store %arg5[%c0_87, %c0_88, %c0_89, %c0_90], %228 {strides = array<i32>} : memref<1x1x16x16xf32, #tpu.memory_space<vmem>>, vector<1x1x16x16xf32>,
    return
  }
  func.func @transform_0(%arg0: i32, %arg1: i32) -> (i32, i32, i32, i32) {
    %c0_i32 = arith.constant 0 : i32
    %c0_i32_0 = arith.constant 0 : i32
    %c0_i32_1 = arith.constant 0 : i32
    return %arg0, %arg1, %c0_i32, %c0_i32_0 : i32, i32, i32, i32
  }
  func.func @transform_1(%arg0: i32, %arg1: i32) -> i32 {
    %c0_i32 = arith.constant 0 : i32
    %c0_i32_0 = arith.constant 0 : i32
    return %c0_i32 : i32
  }
  func.func @transform_2(%arg0: i32, %arg1: i32) -> i32 {
    %c0_i32 = arith.constant 0 : i32
    %c0_i32_0 = arith.constant 0 : i32
    return %c0_i32 : i32
  }
  func.func @transform_3(%arg0: i32, %arg1: i32) -> (i32, i32, i32, i32) {
    %c0_i32 = arith.constant 0 : i32
    %c0_i32_0 = arith.constant 0 : i32
    %c0_i32_1 = arith.constant 0 : i32
    return %arg0, %arg1, %c0_i32, %c0_i32_0 : i32, i32, i32, i32
  }
}

</mosaic_0001>

<llo_original>
// kernel: tpu_custom_call.1
$region0: #{tpu_custom_call.1}
  #allocation0 [shape = 'u32[]', space=smem, size = 0x4, offset = 0x4, fixed_abs, tag = 'smem constant byte address 0x4 - core index']
  #allocation1 [shape = 'u32[144,128]{1,0:T(1,128)}', space=vmem, size = 0x12000, scoped, tag = 'internal scratch']
  %s0 = inlined_call_operand.hbm [shape: f32[2,4,16,16], index: 0, kind: input, shape index: {}]
  %s1 = inlined_call_operand.vmem [shape: f32[36], index: 1, kind: input, shape index: {}]
  %s2 = inlined_call_operand.vmem [shape: f32[4], index: 2, kind: input, shape index: {}]
  %s3 = inlined_call_operand.hbm [shape: f32[2,4,16,16], index: 3, kind: output, shape index: {}]
  %s4 = sld [smem:[#allocation0]]
  $region57: #{tpu_custom_call.1} parent=0
    _
  %s6 = ssub.s32 1, %s4
  %s7 = scalar_select 0, %s6, %s4
  $region1: #{tpu_custom_call.1} parent=0
    #allocation2 [shape = 'u8[16384]{0}', space=vmem, size = 0x4000, scoped, tag = 'input window, operand 0']
    #allocation3 [shape = 's32[2]{0}', space=sflag, size = 0x8, scoped, tag = 'scoped memory for tpu_custom_call.1']
    #allocation4 [shape = 's32[2]{0}', space=sflag, size = 0x8, scoped, tag = 'scoped memory for tpu_custom_call.1']
    #allocation5 [shape = 's32[2]{0}', space=sflag, size = 0x8, scoped, tag = 'scoped memory for tpu_custom_call.1']
    #allocation6 [shape = 'u8[512]{0}', space=smem, size = 0x200, scoped, tag = 'input window, operand 1, single buffered']
    #allocation7 [shape = 'u8[512]{0}', space=smem, size = 0x200, scoped, tag = 'input window, operand 2, single buffered']
    #allocation8 [shape = 's32[1]{0}', space=sflag, size = 0x4, scoped, tag = 'scoped memory for tpu_custom_call.1']
    #allocation9 [shape = 'u8[16384]{0}', space=vmem, size = 0x4000, scoped, tag = 'output window, operand 0']
    %8 = vsyncpa [#allocation3], 0
    %s9 = scalar_lea.sflag [#allocation3], 1
    %10 = vsyncpa %s9, 0
    %11 = vsyncpa [#allocation5], 0
    %12 = vsyncpa [#allocation8], 0
    %13 = vsyncpa [#allocation4], 0
    %s14 = scalar_lea.sflag [#allocation4], 1
    %15 = vsyncpa %s14, 0
    loop: start=0, step=1, limit=10
    $region2: #{tpu_custom_call.1} parent=1 // loop_pre_header
      _
    $region3: #{tpu_custom_call.1} parent=1 // loop_header
      %s17 = sphi 0, %s21
      %p18 = scmp.ge.s32.totalorder %s17, 10
      %s24 = sphi 0, %s36
      %s25 = sphi 0, %s32
      %s26 = sphi 0, %s24
      %s27 = sphi 0, %s25
      %s28 = sphi 0, %s26
      %s29 = sphi 0, %s27
      %s41 = sphi 0, %s43
      %s44 = sphi 0, %s41
      %s45 = sphi 0, %s44
      %s61 = sphi 0, %s45
      %s65 = sphi 0, %s65
      %s67 = sphi 0, %s65
      %s68 = sphi 0, %s67
      %s82 = sphi 0, %s68
      %s86 = sphi 0, %s86
      %s88 = sphi 0, %s86
      %s89 = sphi 0, %s88
      %s103 = sphi 0, %s89
      %s111 = sphi 0, %s113
      %s114 = sphi 0, %s111
      %s115 = sphi 0, %s114
      %s131 = sphi 0, %s115
    $region4: #{tpu_custom_call.1} parent=1 // loop_header_branch
      %20 = sbr.rel (%p18) target = $region8
    $region5: #{tpu_custom_call.1} parent=1 // loop_body
      %s22 = ssub.s32 %s17, 1
      %s23 = ssub.s32 %s17, 2
      %s30 = sadd.s32 1, %s25
      %p31 = scmp.ge.s32.totalorder %s30, 4
      %s32 = scalar_select %p31, 0, %s30
      %s33 = sadd.s32 1, %s24
      %s34 = scalar_select %p31, %s33, %s24
      %p35 = scmp.ge.s32.totalorder %s34, 2
      %s36 = scalar_select %p35, 0, %s34
      %s37 = ssub.s32 %s24, %s36
      %s38 = ssub.s32 %s25, %s32
      %s39 = sor.u32 %s37, %s38
      %p40 = scmp.eq.s32.totalorder %s39, 0
      %s42 = sadd.s32 %s41, 1
      %s43 = scalar_select %p40, %s41, %s42
      %p46 = pneg %p40
      %p47 = scmp.eq.s32.totalorder %s17, 7
      %p48 = por %p46, %p47
      %p49 = scmp.ne.s32.totalorder %s41, %s44
      %p50 = scmp.eq.s32.totalorder %s17, 0
      %p51 = por %p49, %p50
      %p52 = scmp.ne.s32.totalorder %s41, %s44
      %p53 = scmp.eq.s32.totalorder %s22, 7
      %p54 = por %p52, %p53
      %p55 = scmp.ne.s32.totalorder %s44, %s45
      %p56 = scmp.eq.s32.totalorder %s22, 0
      %p57 = por %p55, %p56
      %p58 = scmp.ne.s32.totalorder %s44, %s45
      %p59 = scmp.eq.s32.totalorder %s23, 7
      %p60 = por %p58, %p59
      %p62 = scmp.ne.s32.totalorder %s45, %s61
      %p63 = scmp.eq.s32.totalorder %s23, 0
      %p64 = por %p62, %p63
      %s66 = sadd.s32 %s65, 1
      %p69 = scmp.eq.s32.totalorder %s17, 7
      %p70 = scmp.ne.s32.totalorder %s65, %s67
      %p71 = scmp.eq.s32.totalorder %s17, 0
      %p72 = por %p70, %p71
      %p73 = scmp.ne.s32.totalorder %s65, %s67
      %p74 = scmp.eq.s32.totalorder %s22, 7
      %p75 = por %p73, %p74
      %p76 = scmp.ne.s32.totalorder %s67, %s68
      %p77 = scmp.eq.s32.totalorder %s22, 0
      %p78 = por %p76, %p77
      %p79 = scmp.ne.s32.totalorder %s67, %s68
      %p80 = scmp.eq.s32.totalorder %s23, 7
      %p81 = por %p79, %p80
      %p83 = scmp.ne.s32.totalorder %s68, %s82
      %p84 = scmp.eq.s32.totalorder %s23, 0
      %p85 = por %p83, %p84
      %s87 = sadd.s32 %s86, 1
      %p90 = scmp.eq.s32.totalorder %s17, 7
      %p91 = scmp.ne.s32.totalorder %s86, %s88
      %p92 = scmp.eq.s32.totalorder %s17, 0
      %p93 = por %p91, %p92
      %p94 = scmp.ne.s32.totalorder %s86, %s88
      %p95 = scmp.eq.s32.totalorder %s22, 7
      %p96 = por %p94, %p95
      %p97 = scmp.ne.s32.totalorder %s88, %s89
      %p98 = scmp.eq.s32.totalorder %s22, 0
      %p99 = por %p97, %p98
      %p100 = scmp.ne.s32.totalorder %s88, %s89
      %p101 = scmp.eq.s32.totalorder %s23, 7
      %p102 = por %p100, %p101
      %p104 = scmp.ne.s32.totalorder %s89, %s103
      %p105 = scmp.eq.s32.totalorder %s23, 0
      %p106 = por %p104, %p105
      %s107 = ssub.s32 %s24, %s36
      %s108 = ssub.s32 %s25, %s32
      %s109 = sor.u32 %s107, %s108
      %p110 = scmp.eq.s32.totalorder %s109, 0
      %s112 = sadd.s32 %s111, 1
      %s113 = scalar_select %p110, %s111, %s112
      %p116 = pneg %p110
      %p117 = scmp.eq.s32.totalorder %s17, 7
      %p118 = por %p116, %p117
      %p119 = scmp.ne.s32.totalorder %s111, %s114
      %p120 = scmp.eq.s32.totalorder %s17, 0
      %p121 = por %p119, %p120
      %p122 = scmp.ne.s32.totalorder %s111, %s114
      %p123 = scmp.eq.s32.totalorder %s22, 7
      %p124 = por %p122, %p123
      %p125 = scmp.ne.s32.totalorder %s114, %s115
      %p126 = scmp.eq.s32.totalorder %s22, 0
      %p127 = por %p125, %p126
      %p128 = scmp.ne.s32.totalorder %s114, %s115
      %p129 = scmp.eq.s32.totalorder %s23, 7
      %p130 = por %p128, %p129
      %p132 = scmp.ne.s32.totalorder %s115, %s131
      %p133 = scmp.eq.s32.totalorder %s23, 0
      %p134 = por %p132, %p133
      %p135 = scmp.le.s32.totalorder 1, %s17
      %p136 = scmp.lt.s32.totalorder %s17, 9
      %p137 = pnand %p135, %p136
      %p138 = pneg %p137
      // Predicated region
      $region9: #{tpu_custom_call.1} parent=5 // pred_check
        _
      $region10: #{tpu_custom_call.1} parent=5 // pred_check_branch
        %140 = sbr.rel (%p137) target = $region12
      $region11: #{tpu_custom_call.1} parent=5 // pred_region
        %s141 = ssub.s32 %s17, 1
        // Predicated region
        $region13: #{tpu_custom_call.1} parent=11 // pred_check
          %p142 = pneg %p78
        $region14: #{tpu_custom_call.1} parent=11 // pred_check_branch
          %144 = sbr.rel (%p142) target = $region16
        $region15: #{tpu_custom_call.1} parent=11 // pred_region
          %s146 = ssub.s32 16, 16
          %147 = vsyncadd [#allocation5], %s146
          %s149 = sshll.u32 %s1, 4
          %s150 = int_to_ptr.vmem [resolvable:$true] %s149
          %152 = dma.vmem_to_smem %s150, 16, [#allocation6], [#allocation5]
        $region16: #{tpu_custom_call.1} parent=11 // pred_fallthru
          _
        // Predicated region
        $region17: #{tpu_custom_call.1} parent=11 // pred_check
          %p153 = pneg %p99
        $region18: #{tpu_custom_call.1} parent=11 // pred_check_branch
          %155 = sbr.rel (%p153) target = $region20
        $region19: #{tpu_custom_call.1} parent=11 // pred_region
          %s157 = ssub.s32 16, 16
          %158 = vsyncadd [#allocation8], %s157
          %s160 = sshll.u32 %s2, 4
          %s161 = int_to_ptr.vmem [resolvable:$true] %s160
          %163 = dma.vmem_to_smem %s161, 16, [#allocation7], [#allocation8]
        $region20: #{tpu_custom_call.1} parent=11 // pred_fallthru
          _
      $region12: #{tpu_custom_call.1} parent=5 // pred_fallthru
        _
      %p164 = scmp.lt.s32.totalorder %s17, 8
      // Predicated region
      $region21: #{tpu_custom_call.1} parent=5 // pred_check
        %p165 = pneg %p164
      $region22: #{tpu_custom_call.1} parent=5 // pred_check_branch
        %167 = sbr.rel (%p165) target = $region24
      $region23: #{tpu_custom_call.1} parent=5 // pred_region
        // Predicated region
        $region25: #{tpu_custom_call.1} parent=23 // pred_check
          %p168 = pneg %p51
        $region26: #{tpu_custom_call.1} parent=23 // pred_check_branch
          %170 = sbr.rel (%p168) target = $region28
        $region27: #{tpu_custom_call.1} parent=23 // pred_region
          %s171 = sand.u32 %s41, 1
          %s172 = scalar_lea.sflag [#allocation3], %s171
          %s173 = sand.u32 %s41, 1
          %s174 = smul.addr %s173, 16
          %s175 = scalar_lea.vmem [#allocation2], %s174
          %s177 = ssub.s32 256, 256
          %178 = vsyncadd %s172, %s177
          %s179 = smul.addr %s25, 2
          %s180 = smul.addr %s24, 8
          %s181 = sadd.s32 %s179, %s180
          %s182 = smul.addr %s181, 128
          %s183 = scalar_lea.hbm %s0, %s182
          %s184 = sshll.u32 %s175, 4
          %s185 = int_to_ptr.vmem [resolvable:$true] %s184
          %190 = dma.hbm_to_vmem [thread:$0]  %s183, 256, %s185, %s172, 128, 128, 8
        $region28: #{tpu_custom_call.1} parent=23 // pred_fallthru
          _
      $region24: #{tpu_custom_call.1} parent=5 // pred_fallthru
        _
      %p191 = scmp.le.s32.totalorder 1, %s17
      %p192 = scmp.lt.s32.totalorder %s17, 9
      %p193 = pnand %p191, %p192
      %p194 = pneg %p193
      // Predicated region
      $region29: #{tpu_custom_call.1} parent=5 // pred_check
        _
      $region30: #{tpu_custom_call.1} parent=5 // pred_check_branch
        %196 = sbr.rel (%p193) target = $region32
      $region31: #{tpu_custom_call.1} parent=5 // pred_region
        %s197 = ssub.s32 %s17, 1
        %s198 = sand.u32 %s44, 1
        %s199 = scalar_lea.sflag [#allocation3], %s198
        %s200 = sand.u32 %s44, 1
        %s201 = smul.addr %s200, 16
        %s202 = scalar_lea.vmem [#allocation2], %s201
        // Predicated region
        $region33: #{tpu_custom_call.1} parent=31 // pred_check
          %p203 = pneg %p57
        $region34: #{tpu_custom_call.1} parent=31 // pred_check_branch
          %205 = sbr.rel (%p203) target = $region36
        $region35: #{tpu_custom_call.1} parent=31 // pred_region
          %206 = dma.done %s199, 256
        $region36: #{tpu_custom_call.1} parent=31 // pred_fallthru
          _
        // Predicated region
        $region37: #{tpu_custom_call.1} parent=31 // pred_check
          %p207 = pneg %p78
        $region38: #{tpu_custom_call.1} parent=31 // pred_check_branch
          %209 = sbr.rel (%p207) target = $region40
        $region39: #{tpu_custom_call.1} parent=31 // pred_region
          %210 = dma.done [#allocation5], 16
        $region40: #{tpu_custom_call.1} parent=31 // pred_fallthru
          _
        // Predicated region
        $region41: #{tpu_custom_call.1} parent=31 // pred_check
          %p211 = pneg %p99
        $region42: #{tpu_custom_call.1} parent=31 // pred_check_branch
          %213 = sbr.rel (%p211) target = $region44
        $region43: #{tpu_custom_call.1} parent=31 // pred_region
          %214 = dma.done [#allocation8], 16
        $region44: #{tpu_custom_call.1} parent=31 // pred_fallthru
          _
        %215 = sfence
        %s216 = sand.u32 %s44, 1
        %s217 = scalar_lea.sflag [#allocation3], %s216
        %s218 = sand.u32 %s44, 1
        %s219 = smul.addr %s218, 16
        %s220 = scalar_lea.vmem [#allocation2], %s219
        %p221 = pneg %p57
        %p222 = pneg %p54
        %p223 = pneg %p78
        %p224 = pneg %p75
        %p225 = pneg %p99
        %p226 = pneg %p96
        %p227 = pneg %p127
        %p228 = pneg %p124
        %s229 = sand.u32 %s114, 1
        %s230 = scalar_lea.sflag [#allocation4], %s229
        %s231 = sand.u32 %s114, 1
        %s232 = smul.addr %s231, 16
        %s233 = scalar_lea.vmem [#allocation9], %s232
        %v234 = vld [vmem:[%s202] sm:$0xff]
        %v235 = vld [vmem:[%s202 + $0x8] sm:$0xff]
        %v236 = vlaneseq
        %v237 = vshrl.u32 %v236, 7
        %v238 = vadd.s32 %v237, 8
        %v239 = vlaneseq
        %v240 = vand.u32 %v239, 127
        %v241 = vrot.slane %v234, 7
        %v242 = vrot.slane %v235, 7
        %vm243 = vcmp.lt.s32.totalorder %v237, 1
        %v244 = vsel %vm243, %v241, %v242
        %v245 = vsel %vm243, %v242, %v241
        %v246 = vadd.s32 %v237, 4294967295
        %v247 = vadd.s32 %v238, 4294967295
        %vm248 = vcmp.ge.s32.totalorder %v246, 0
        %vm249 = vcmp.ge.s32.totalorder %v247, 0
        %vm250 = vcmp.lt.s32.totalorder %v246, 16
        %vm251 = vcmp.lt.s32.totalorder %v247, 16
        %vm252 = vmand %vm248, %vm250
        %vm253 = vmand %vm249, %vm251
        %vm254 = vcmask 1047680
        %255 = vrot.lane.b32.xlu0 %v245, 16
        %v256 = vpop.permute.xlu0 %255
        %v257 = vsel %vm254, %v256, %v245
        %258 = vrot.lane.b32.xlu0 %v244, 16
        %v259 = vpop.permute.xlu0 %258
        %v260 = vsel %vm254, %v259, %v244
        %261 = vrot.lane.b32.xlu0 %v257, 16
        %v262 = vpop.permute.xlu0 %261
        %263 = vrot.lane.b32.xlu0 %v260, 16
        %v264 = vpop.permute.xlu0 %263
        %v265 = vsel %vm254, %v262, %v245
        %v266 = vsel %vm254, %v264, %v244
        %v267 = vadd.s32 %v240, 4294967295
        %vm268 = vcmp.ge.s32.totalorder %v267, 0
        %vm269 = vcmp.lt.s32.totalorder %v267, 16
        %vm270 = vmand %vm268, %vm269
        %vm271 = vmand %vm252, %vm270
        %vm272 = vmand %vm253, %vm270
        %s273 = smul.u32 %s27, 9
        %s274 = sld [smem:[#allocation6 + %s273]]
        %277 = vrot.lane.b32.xlu0 %v265, 113
        %v278 = vpop.permute.xlu0 %277
        %279 = vrot.lane.b32.xlu0 %v266, 113
        %v280 = vpop.permute.xlu0 %279
        %v283 = vsel %vm271, %v278, 0.0
        %v284 = vsel %vm272, %v280, 0.0
        %v285 = vstv %s274
        %v286 = vmul.f32 %v283, %v285
        %v287 = vmul.f32 %v284, %v285
        %v288 = vadd.f32 %v286, 0.0
        %v289 = vadd.f32 %v287, 0.0
        %vm290 = vcmp.ge.s32.totalorder %v240, 0
        %vm291 = vcmp.lt.s32.totalorder %v240, 16
        %vm292 = vmand %vm290, %vm291
        %vm293 = vmand %vm252, %vm292
        %vm294 = vmand %vm253, %vm292
        %s295 = sadd.s32 %s273, 1
        %s296 = sld [smem:[#allocation6 + %s295]]
        %v297 = vsel %vm293, %v245, 0.0
        %v298 = vsel %vm294, %v244, 0.0
        %v299 = vstv %s296
        %v300 = vmul.f32 %v297, %v299
        %v301 = vmul.f32 %v298, %v299
        %v302 = vadd.f32 %v288, %v300
        %v303 = vadd.f32 %v289, %v301
        %v304 = vadd.s32 %v240, 1
        %vm305 = vcmp.ge.s32.totalorder %v304, 0
        %vm306 = vcmp.lt.s32.totalorder %v304, 16
        %vm307 = vmand %vm305, %vm306
        %vm308 = vmand %vm252, %vm307
        %vm309 = vmand %vm253, %vm307
        %s310 = sadd.s32 %s273, 2
        %s311 = sld [smem:[#allocation6 + %s310]]
        %312 = vrot.lane.b32.xlu0 %v265, 127
        %v313 = vpop.permute.xlu0 %312
        %314 = vrot.lane.b32.xlu0 %v266, 127
        %v315 = vpop.permute.xlu0 %314
        %v318 = vsel %vm308, %v313, 0.0
        %v319 = vsel %vm309, %v315, 0.0
        %v320 = vstv %s311
        %v321 = vmul.f32 %v318, %v320
        %v322 = vmul.f32 %v319, %v320
        %v323 = vadd.f32 %v302, %v321
        %v324 = vadd.f32 %v303, %v322
        %vm325 = vcmp.ge.s32.totalorder %v237, 0
        %vm326 = vcmp.ge.s32.totalorder %v238, 0
        %vm327 = vcmp.lt.s32.totalorder %v237, 16
        %vm328 = vcmp.lt.s32.totalorder %v238, 16
        %vm329 = vmand %vm325, %vm327
        %vm330 = vmand %vm326, %vm328
        %331 = vrot.lane.b32.xlu0 %v234, 16
        %v332 = vpop.permute.xlu0 %331
        %v333 = vsel %vm254, %v332, %v234
        %334 = vrot.lane.b32.xlu0 %v235, 16
        %v335 = vpop.permute.xlu0 %334
        %v336 = vsel %vm254, %v335, %v235
        %337 = vrot.lane.b32.xlu0 %v333, 16
        %v338 = vpop.permute.xlu0 %337
        %339 = vrot.lane.b32.xlu0 %v336, 16
        %v340 = vpop.permute.xlu0 %339
        %v341 = vsel %vm254, %v338, %v234
        %v342 = vsel %vm254, %v340, %v235
        %vm343 = vmand %vm329, %vm270
        %vm344 = vmand %vm330, %vm270
        %s345 = sadd.s32 %s273, 3
        %s346 = sld [smem:[#allocation6 + %s345]]
        %349 = vrot.lane.b32.xlu0 %v341, 113
        %v350 = vpop.permute.xlu0 %349
        %351 = vrot.lane.b32.xlu0 %v342, 113
        %v352 = vpop.permute.xlu0 %351
        %v355 = vsel %vm343, %v350, 0.0
        %v356 = vsel %vm344, %v352, 0.0
        %v357 = vstv %s346
        %v358 = vmul.f32 %v355, %v357
        %v359 = vmul.f32 %v356, %v357
        %v360 = vadd.f32 %v323, %v358
        %v361 = vadd.f32 %v324, %v359
        %vm362 = vmand %vm329, %vm292
        %vm363 = vmand %vm330, %vm292
        %s364 = sadd.s32 %s273, 4
        %s365 = sld [smem:[#allocation6 + %s364]]
        %v366 = vsel %vm362, %v234, 0.0
        %v367 = vsel %vm363, %v235, 0.0
        %v368 = vstv %s365
        %v369 = vmul.f32 %v366, %v368
        %v370 = vmul.f32 %v367, %v368
        %v371 = vadd.f32 %v360, %v369
        %v372 = vadd.f32 %v361, %v370
        %vm373 = vmand %vm329, %vm307
        %vm374 = vmand %vm330, %vm307
        %s375 = sadd.s32 %s273, 5
        %s376 = sld [smem:[#allocation6 + %s375]]
        %377 = vrot.lane.b32.xlu0 %v341, 127
        %v378 = vpop.permute.xlu0 %377
        %379 = vrot.lane.b32.xlu0 %v342, 127
        %v380 = vpop.permute.xlu0 %379
        %v383 = vsel %vm373, %v378, 0.0
        %v384 = vsel %vm374, %v380, 0.0
        %v385 = vstv %s376
        %v386 = vmul.f32 %v383, %v385
        %v387 = vmul.f32 %v384, %v385
        %v388 = vadd.f32 %v371, %v386
        %v389 = vadd.f32 %v372, %v387
        %v390 = vrot.slane %v234, 1
        %v391 = vrot.slane %v235, 1
        %vm392 = vcmp.lt.s32.totalorder %v237, 7
        %v393 = vsel %vm392, %v390, %v391
        %v394 = vsel %vm392, %v391, %v390
        %v395 = vadd.s32 %v237, 1
        %v396 = vadd.s32 %v238, 1
        %vm397 = vcmp.ge.s32.totalorder %v395, 0
        %vm398 = vcmp.ge.s32.totalorder %v396, 0
        %vm399 = vcmp.lt.s32.totalorder %v395, 16
        %vm400 = vcmp.lt.s32.totalorder %v396, 16
        %vm401 = vmand %vm397, %vm399
        %vm402 = vmand %vm398, %vm400
        %403 = vrot.lane.b32.xlu0 %v393, 16
        %v404 = vpop.permute.xlu0 %403
        %v405 = vsel %vm254, %v404, %v393
        %406 = vrot.lane.b32.xlu0 %v394, 16
        %v407 = vpop.permute.xlu0 %406
        %v408 = vsel %vm254, %v407, %v394
        %409 = vrot.lane.b32.xlu0 %v405, 16
        %v410 = vpop.permute.xlu0 %409
        %411 = vrot.lane.b32.xlu0 %v408, 16
        %v412 = vpop.permute.xlu0 %411
        %v413 = vsel %vm254, %v410, %v393
        %v414 = vsel %vm254, %v412, %v394
        %vm415 = vmand %vm401, %vm270
        %vm416 = vmand %vm402, %vm270
        %s417 = sadd.s32 %s273, 6
        %s418 = sld [smem:[#allocation6 + %s417]]
        %421 = vrot.lane.b32.xlu0 %v413, 113
        %v422 = vpop.permute.xlu0 %421
        %423 = vrot.lane.b32.xlu0 %v414, 113
        %v424 = vpop.permute.xlu0 %423
        %v427 = vsel %vm415, %v422, 0.0
        %v428 = vsel %vm416, %v424, 0.0
        %v429 = vstv %s418
        %v430 = vmul.f32 %v427, %v429
        %v431 = vmul.f32 %v428, %v429
        %v432 = vadd.f32 %v388, %v430
        %v433 = vadd.f32 %v389, %v431
        %vm434 = vmand %vm401, %vm292
        %vm435 = vmand %vm402, %vm292
        %s436 = sadd.s32 %s273, 7
        %s437 = sld [smem:[#allocation6 + %s436]]
        %v438 = vsel %vm434, %v393, 0.0
        %v439 = vsel %vm435, %v394, 0.0
        %v440 = vstv %s437
        %v441 = vmul.f32 %v438, %v440
        %v442 = vmul.f32 %v439, %v440
        %v443 = vadd.f32 %v432, %v441
        %v444 = vadd.f32 %v433, %v442
        %vm445 = vmand %vm401, %vm307
        %vm446 = vmand %vm402, %vm307
        %s447 = sadd.s32 %s273, 8
        %s448 = sld [smem:[#allocation6 + %s447]]
        %449 = vrot.lane.b32.xlu0 %v413, 127
        %v450 = vpop.permute.xlu0 %449
        %451 = vrot.lane.b32.xlu0 %v414, 127
        %v452 = vpop.permute.xlu0 %451
        %v455 = vsel %vm445, %v450, 0.0
        %v456 = vsel %vm446, %v452, 0.0
        %v457 = vstv %s448
        %v458 = vmul.f32 %v455, %v457
        %v459 = vmul.f32 %v456, %v457
        %v460 = vadd.f32 %v443, %v458
        %v461 = vadd.f32 %v444, %v459
        %s462 = sld [smem:[#allocation7 + %s27]]
        %v463 = vstv %s462
        %v464 = vadd.f32 %v460, %v463
        %v465 = vadd.f32 %v461, %v463
        %v466 = vmax.f32 %v464, 0.0
        %v467 = vmax.f32 %v465, 0.0
        %vm468 = vcmask 130048
        %469 = vst.msk [vmem:[%s233] sm:$0xff] %vm468, %v466
        %470 = vst.msk [vmem:[%s233 + $0x8] sm:$0xff] %vm468, %v467
        %s471 = sand.u32 %s114, 1
        %s472 = scalar_lea.sflag [#allocation4], %s471
        %s473 = sand.u32 %s114, 1
        %s474 = smul.addr %s473, 16
        %s475 = scalar_lea.vmem [#allocation9], %s474
        // Predicated region
        $region45: #{tpu_custom_call.1} parent=31 // pred_check
          %p476 = pneg %p124
        $region46: #{tpu_custom_call.1} parent=31 // pred_check_branch
          %478 = sbr.rel (%p476) target = $region48
        $region47: #{tpu_custom_call.1} parent=31 // pred_region
          %s480 = ssub.s32 256, 256
          %481 = vsyncadd %s472, %s480
          %s482 = smul.addr %s27, 2
          %s483 = smul.addr %s26, 8
          %s484 = sadd.s32 %s482, %s483
          %s485 = smul.addr %s484, 128
          %s486 = scalar_lea.hbm %s3, %s485
          %s487 = sshll.u32 %s475, 4
          %s488 = int_to_ptr.vmem [resolvable:$true] %s487
          %493 = dma.vmem_to_hbm [thread:$0]  %s488, 256, %s486, %s472, 128, 128, 8
        $region48: #{tpu_custom_call.1} parent=31 // pred_fallthru
          _
      $region32: #{tpu_custom_call.1} parent=5 // pred_fallthru
        _
      %p494 = scmp.le.s32.totalorder 2, %s17
      // Predicated region
      $region49: #{tpu_custom_call.1} parent=5 // pred_check
        %p495 = pneg %p494
      $region50: #{tpu_custom_call.1} parent=5 // pred_check_branch
        %497 = sbr.rel (%p495) target = $region52
      $region51: #{tpu_custom_call.1} parent=5 // pred_region
        %s498 = ssub.s32 %s17, 2
        // Predicated region
        $region53: #{tpu_custom_call.1} parent=51 // pred_check
          %p499 = pneg %p130
        $region54: #{tpu_custom_call.1} parent=51 // pred_check_branch
          %501 = sbr.rel (%p499) target = $region56
        $region55: #{tpu_custom_call.1} parent=51 // pred_region
          %s502 = sand.u32 %s115, 1
          %s503 = scalar_lea.sflag [#allocation4], %s502
          %s504 = sand.u32 %s115, 1
          %s505 = smul.addr %s504, 16
          %s506 = scalar_lea.vmem [#allocation9], %s505
          %507 = dma.done %s503, 256
        $region56: #{tpu_custom_call.1} parent=51 // pred_fallthru
          _
      $region52: #{tpu_custom_call.1} parent=5 // pred_fallthru
        _
    $region6: #{tpu_custom_call.1} parent=1 // loop_footer
      %s21 = sadd.s32 1, %s17
    $region7: #{tpu_custom_call.1} parent=1 // loop_footer_branch
      %16 = sbr.rel target = $region3
    $region8: #{tpu_custom_call.1} parent=1 // loop_exit
      _
    %508 = vsyncpa [#allocation3], 1
    %s509 = scalar_lea.sflag [#allocation3], 1
    %510 = vsyncpa %s509, 1
    %511 = vsyncpa [#allocation4], 1
    %s512 = scalar_lea.sflag [#allocation4], 1
    %513 = vsyncpa %s512, 1
    %514 = vsyncpa [#allocation5], 1
    %s515 = scalar_lea.sflag [#allocation5], 1
    %516 = vsyncpa %s515, 1
    %517 = vsyncpa [#allocation8], 1

</llo_original>
